<compile_context>
chip_gen: v7x
topology: tpu7x:2x2x1
jax: 0.10.0
libtpu: 0.0.40
codegen_flags: <defaults>
</compile_context>

<pallas_src>
import functools

import jax
import jax.numpy as jnp
from jax.experimental import pallas as pl
from jax.experimental.pallas import tpu as pltpu


def _surrogate_kernel(x_ref, w1_ref, b1_ref, w2_ref, b2_ref, w3_ref, b3_ref, o_ref):
    # Fused 3-layer MLP on one (block_b, D) batch tile.  Intermediates stay in
    # vregs/VMEM (never round-trip to HBM).
    x = x_ref[...].astype(jnp.bfloat16)
    h1 = jnp.dot(x, w1_ref[...], preferred_element_type=jnp.float32) + b1_ref[...]
    h1 = jnp.maximum(h1, 0.0)
    h2 = jnp.dot(h1.astype(jnp.bfloat16), w2_ref[...],
                 preferred_element_type=jnp.float32) + b2_ref[...]
    h2 = jnp.maximum(h2, 0.0)
    # Layer 3 has N=1: VPU elementwise multiply + XLU cross-lane reduce instead of
    # a 1-column MXU matmul.  Keep the natural (block_b, 1) column layout — the
    # output is tiny, so no lane-dense relayout is worth doing.
    y = jnp.sum(h2 * w3_ref[...], axis=-1, keepdims=True)   # (block_b, 1) f32
    o_ref[...] = y + b3_ref[0]                               # SMEM scalar bias


def _pick_tiling(batch: int):
    """Pad batch to a multiple of 128 and pick a large batch tile.

    Prefers an EVEN number of grid steps (v7x megacore shards the 'parallel'
    batch axis across 2 TensorCores), then >= 2 steps, then a single tile.
    """
    padded = max(128, ((batch + 127) // 128) * 128)
    candidates = (2048, 1024, 512, 256, 128)
    for bb in candidates:                      # even tile count
        if padded % bb == 0 and (padded // bb) >= 2 and (padded // bb) % 2 == 0:
            return padded, bb
    for bb in candidates:                      # >= 2 tiles
        if padded % bb == 0 and (padded // bb) >= 2:
            return padded, bb
    for bb in candidates:                      # single tile (small batches)
        if padded % bb == 0:
            return padded, bb
    return padded, 128


@functools.partial(jax.jit, static_argnames=("block_b",))
def surrogate_forward(x, w1, b1, w2, b2, w3, b3, *, block_b=None):
    B, D = x.shape
    H1 = w1.shape[1]
    H2 = w2.shape[1]

    padded_b, auto_bb = _pick_tiling(B)
    if block_b is None:
        block_b = auto_bb
    assert padded_b % block_b == 0
    num_tiles = padded_b // block_b

    # Pad the batch with zero rows; extra outputs are sliced off at the end.
    if padded_b != B:
        x = jnp.pad(x, ((0, padded_b - B), (0, 0)))

    # Pre-cast MXU weights to bf16 once (halves their HBM traffic); biases and
    # the final (VPU) weight row stay f32.  b3 becomes an SMEM scalar.
    w1_bf = w1.astype(jnp.bfloat16)
    w2_bf = w2.astype(jnp.bfloat16)
    w3_row = w3.reshape(1, H2).astype(jnp.float32)
    b3_s = b3.reshape(1).astype(jnp.float32)
    # TODO(synk): on v7x only, fp8 operands for layer 2 could be evaluated.

    # Keep the VMEM request well under v7x's 64 MiB physical VMEM.
    vmem_limit = (48 if block_b >= 2048 else 32) * 1024 * 1024

    flops = 2 * padded_b * (D * H1 + H1 * H2 + H2)
    bytes_accessed = (padded_b * D * 4                      # x (f32 in HBM)
                      + (D * H1 + H1 * H2) * 2              # bf16 weights
                      + (H1 + H2 + H2) * 4 + 4              # biases + w3 row + b3
                      + padded_b * 4)                       # output

    out = pl.pallas_call(
        _surrogate_kernel,
        out_shape=jax.ShapeDtypeStruct((padded_b, 1), jnp.float32),
        grid=(num_tiles,),
        in_specs=[
            # batch-tiled activations
            pl.BlockSpec((block_b, D), lambda i: (i, 0)),
            # full (small) weights / biases; constant index_map -> DMA'd once
            pl.BlockSpec((D, H1), lambda i: (0, 0)),
            pl.BlockSpec((1, H1), lambda i: (0, 0)),
            pl.BlockSpec((H1, H2), lambda i: (0, 0)),
            pl.BlockSpec((1, H2), lambda i: (0, 0)),
            pl.BlockSpec((1, H2), lambda i: (0, 0)),
            # final bias as an SMEM scalar
            pl.BlockSpec(memory_space=pltpu.MemorySpace.SMEM),
        ],
        out_specs=pl.BlockSpec((block_b, 1), lambda i: (i, 0)),
        compiler_params=pltpu.CompilerParams(
            dimension_semantics=("parallel",),
            vmem_limit_bytes=vmem_limit,
        ),
        cost_estimate=pl.CostEstimate(
            flops=flops, transcendentals=0, bytes_accessed=bytes_accessed),
    )(x, w1_bf, b1, w2_bf, b2, w3_row, b3_s)

    return out[:B]


def init_surrogate_params(key, input_size):
    """Deterministic init matching PyTorch nn.Linear shapes.

    PyTorch Linear(in, out) has weight (out, in); we store the transpose (in, out)
    so the kernel computes x @ W + b.  Uses uniform(-1/sqrt(in), 1/sqrt(in)) like
    PyTorch's default init.
    """
    dims = [(input_size, 512), (512, 256), (256, 1)]
    params = []
    for (fan_in, fan_out) in dims:
        key, kw, kb = jax.random.split(key, 3)
        bound = 1.0 / jnp.sqrt(jnp.float32(fan_in))
        w = jax.random.uniform(kw, (fan_in, fan_out), jnp.float32, -bound, bound)
        b = jax.random.uniform(kb, (1, fan_out), jnp.float32, -bound, bound)
        params += [w, b]
    return params


def surrogate_reference(x, w1, b1, w2, b2, w3, b3, matmul_dtype=jnp.float32):
    h1 = jnp.maximum(
        jnp.dot(x.astype(matmul_dtype), w1.astype(matmul_dtype),
                preferred_element_type=jnp.float32) + b1, 0.0)
    h2 = jnp.maximum(
        jnp.dot(h1.astype(matmul_dtype), w2.astype(matmul_dtype),
                preferred_element_type=jnp.float32) + b2, 0.0)
    return h2 @ w3 + b3


if __name__ == "__main__":
    key = jax.random.PRNGKey(0)
    key, kx = jax.random.split(key)

    batch = 4
    input_size = 32

    x = jax.random.normal(kx, (batch, input_size), jnp.float32)
    w1, b1, w2, b2, w3, b3 = init_surrogate_params(key, input_size)

    out = surrogate_forward(x, w1, b1, w2, b2, w3, b3)
    out = jax.block_until_ready(out)
    assert out.shape == (batch, 1), out.shape

    # Matched-precision reference (same bf16-operand / f32-accumulate matmuls).
    ref_bf16 = surrogate_reference(x, w1, b1, w2, b2, w3, b3,
                                   matmul_dtype=jnp.bfloat16)
    assert jnp.allclose(out, ref_bf16, atol=2e-3, rtol=2e-3), \
        "mismatch vs matched-precision reference"

    # Full-f32 reference (module semantics); tolerance covers bf16 operand rounding.
    ref_f32 = surrogate_reference(x, w1, b1, w2, b2, w3, b3,
                                  matmul_dtype=jnp.float32)
    assert jnp.allclose(out, ref_f32, atol=1e-1, rtol=1e-1), \
        "mismatch vs f32 reference"

    print("KERNEL_OK")
</pallas_src>

<mosaic_0001>
module attributes {stable_mosaic.version = 11 : i64} {
  func.func @_surrogate_kernel(%arg0: i32, %arg1: memref<128x32xf32, #tpu.memory_space<vmem>>, %arg2: memref<32x512xbf16, #tpu.memory_space<vmem>>, %arg3: memref<1x512xf32, #tpu.memory_space<vmem>>, %arg4: memref<512x256xbf16, #tpu.memory_space<vmem>>, %arg5: memref<1x256xf32, #tpu.memory_space<vmem>>, %arg6: memref<1x256xf32, #tpu.memory_space<vmem>>, %arg7: memref<1xf32, #tpu.memory_space<smem>>, %arg8: memref<128x1xf32, #tpu.memory_space<vmem>>) attributes {dimension_semantics = [#tpu.dimension_semantics<parallel>], iteration_bounds = array<i64: 1>, scalar_prefetch = 0 : i64, scratch_operands = 0 : i64, tpu.core_type = #tpu.core_type<tc>, window_params = [{transform_indices = @transform_0, window_bounds = array<i64: 128, 32>}, {pipeline_mode = #tpu.pipeline_mode<synchronous>, transform_indices = @transform_1, window_bounds = array<i64: 32, 512>}, {pipeline_mode = #tpu.pipeline_mode<synchronous>, transform_indices = @transform_2, window_bounds = array<i64: 1, 512>}, {pipeline_mode = #tpu.pipeline_mode<synchronous>, transform_indices = @transform_3, window_bounds = array<i64: 512, 256>}, {pipeline_mode = #tpu.pipeline_mode<synchronous>, transform_indices = @transform_4, window_bounds = array<i64: 1, 256>}, {pipeline_mode = #tpu.pipeline_mode<synchronous>, transform_indices = @transform_5, window_bounds = array<i64: 1, 256>}, {transform_indices = @transform_6, window_bounds = array<i64: 1>}, {transform_indices = @transform_7, window_bounds = array<i64: 128, 1>}]} {
    %c0 = arith.constant 0 : index
    %c0_0 = arith.constant 0 : index
    %0 = vector.load %arg1[%c0, %c0_0] : memref<128x32xf32, #tpu.memory_space<vmem>>, vector<128x32xf32>
    %1 = arith.truncf %0 : vector<128x32xf32> to vector<128x32xbf16>
    %c0_1 = arith.constant 0 : index
    %c0_2 = arith.constant 0 : index
    %2 = vector.load %arg2[%c0_1, %c0_2] : memref<32x512xbf16, #tpu.memory_space<vmem>>, vector<32x512xbf16>
    %cst = arith.constant dense<0.000000e+00> : vector<128x512xf32>
    %3 = tpu.matmul %1, %2, %cst {dimension_numbers = #tpu.dot_dimension_numbers<[1], [0], [0], [1], [0, 0, 1, 1], [], []>} : vector<128x32xbf16>, vector<32x512xbf16>, vector<128x512xf32> -> vector<128x512xf32>
    %c0_3 = arith.constant 0 : index
    %c0_4 = arith.constant 0 : index
    %4 = vector.load %arg3[%c0_3, %c0_4] : memref<1x512xf32, #tpu.memory_space<vmem>>, vector<1x512xf32>
    %5 = vector.broadcast %4 : vector<1x512xf32> to vector<128x512xf32>
    %6 = arith.addf %3, %5 : vector<128x512xf32>
    %cst_5 = arith.constant 0.000000e+00 : f32
    %7 = vector.broadcast %cst_5 : f32 to vector<128x512xf32>
    %8 = arith.maximumf %6, %7 : vector<128x512xf32>
    %9 = arith.truncf %8 : vector<128x512xf32> to vector<128x512xbf16>
    %c0_6 = arith.constant 0 : index
    %c0_7 = arith.constant 0 : index
    %10 = vector.load %arg4[%c0_6, %c0_7] : memref<512x256xbf16, #tpu.memory_space<vmem>>, vector<512x256xbf16>
    %cst_8 = arith.constant dense<0.000000e+00> : vector<128x256xf32>
    %11 = tpu.matmul %9, %10, %cst_8 {dimension_numbers = #tpu.dot_dimension_numbers<[1], [0], [0], [1], [0, 0, 1, 1], [], []>} : vector<128x512xbf16>, vector<512x256xbf16>, vector<128x256xf32> -> vector<128x256xf32>
    %c0_9 = arith.constant 0 : index
    %c0_10 = arith.constant 0 : index
    %12 = vector.load %arg5[%c0_9, %c0_10] : memref<1x256xf32, #tpu.memory_space<vmem>>, vector<1x256xf32>
    %13 = vector.broadcast %12 : vector<1x256xf32> to vector<128x256xf32>
    %14 = arith.addf %11, %13 : vector<128x256xf32>
    %cst_11 = arith.constant 0.000000e+00 : f32
    %15 = vector.broadcast %cst_11 : f32 to vector<128x256xf32>
    %16 = arith.maximumf %14, %15 : vector<128x256xf32>
    %c0_12 = arith.constant 0 : index
    %c0_13 = arith.constant 0 : index
    %17 = vector.load %arg6[%c0_12, %c0_13] : memref<1x256xf32, #tpu.memory_space<vmem>>, vector<1x256xf32>
    %18 = vector.broadcast %17 : vector<1x256xf32> to vector<128x256xf32>
    %19 = arith.mulf %16, %18 : vector<128x256xf32>
    %cst_14 = arith.constant dense<0.000000e+00> : vector<128xf32>
    %20 = vector.multi_reduction <add>, %19, %cst_14 [1] : vector<128x256xf32> to vector<128xf32>
    %21 = vector.shape_cast %20 : vector<128xf32> to vector<128x1xf32>
    %c0_15 = arith.constant 0 : index
    %22 = memref.load %arg7[%c0_15] : memref<1xf32, #tpu.memory_space<smem>>
    %23 = vector.broadcast %22 : f32 to vector<128x1xf32>
    %24 = arith.addf %21, %23 : vector<128x1xf32>
    %c0_16 = arith.constant 0 : index
    %c0_17 = arith.constant 0 : index
    %25 = vector.load %arg8[%c0_16, %c0_17] : memref<128x1xf32, #tpu.memory_space<vmem>>, vector<128x1xf32>
    tpu.vector_store %arg8[%c0_16, %c0_17], %24 {strides = array<i32>} : memref<128x1xf32, #tpu.memory_space<vmem>>, vector<128x1xf32>,
    return
  }
  func.func @transform_0(%arg0: i32) -> (i32, i32) {
    %c0_i32 = arith.constant 0 : i32
    %c0_i32_0 = arith.constant 0 : i32
    return %arg0, %c0_i32 : i32, i32
  }
  func.func @transform_1(%arg0: i32) -> (i32, i32) {
    %c0_i32 = arith.constant 0 : i32
    %c0_i32_0 = arith.constant 0 : i32
    %c0_i32_1 = arith.constant 0 : i32
    return %c0_i32, %c0_i32_0 : i32, i32
  }
  func.func @transform_2(%arg0: i32) -> (i32, i32) {
    %c0_i32 = arith.constant 0 : i32
    %c0_i32_0 = arith.constant 0 : i32
    %c0_i32_1 = arith.constant 0 : i32
    return %c0_i32, %c0_i32_0 : i32, i32
  }
  func.func @transform_3(%arg0: i32) -> (i32, i32) {
    %c0_i32 = arith.constant 0 : i32
    %c0_i32_0 = arith.constant 0 : i32
    %c0_i32_1 = arith.constant 0 : i32
    return %c0_i32, %c0_i32_0 : i32, i32
  }
  func.func @transform_4(%arg0: i32) -> (i32, i32) {
    %c0_i32 = arith.constant 0 : i32
    %c0_i32_0 = arith.constant 0 : i32
    %c0_i32_1 = arith.constant 0 : i32
    return %c0_i32, %c0_i32_0 : i32, i32
  }
  func.func @transform_5(%arg0: i32) -> (i32, i32) {
    %c0_i32 = arith.constant 0 : i32
    %c0_i32_0 = arith.constant 0 : i32
    %c0_i32_1 = arith.constant 0 : i32
    return %c0_i32, %c0_i32_0 : i32, i32
  }
  func.func @transform_6(%arg0: i32) -> i32 {
    %c0_i32 = arith.constant 0 : i32
    %c0_i32_0 = arith.constant 0 : i32
    return %c0_i32 : i32
  }
  func.func @transform_7(%arg0: i32) -> (i32, i32) {
    %c0_i32 = arith.constant 0 : i32
    %c0_i32_0 = arith.constant 0 : i32
    return %arg0, %c0_i32 : i32, i32
  }
}

</mosaic_0001>

<llo_original>
// kernel: surrogate_forward.1
$region0: #{surrogate_forward.1}
  #allocation0 [shape = 'u32[]', space=smem, size = 0x4, offset = 0x4, fixed_abs, tag = 'smem constant byte address 0x4 - core index']
  #allocation1 [shape = 'u32[144,128]{1,0:T(1,128)}', space=vmem, size = 0x12000, scoped, tag = 'internal scratch']
  #allocation2 [shape = 'f32[1]{0:T(128)S(6)}', space=smem, size = 0x200, scoped, tag = 'scoped memory for surrogate_forward.1']
  %s0 = inlined_call_operand.vmem [shape: f32[128,32], index: 0, kind: input, shape index: {}]
  %s1 = inlined_call_operand.vmem [shape: bf16[32,512], index: 1, kind: input, shape index: {}]
  %s2 = inlined_call_operand.vmem [shape: f32[1,512], index: 2, kind: input, shape index: {}]
  %s3 = inlined_call_operand.vmem [shape: bf16[512,256], index: 3, kind: input, shape index: {}]
  %s4 = inlined_call_operand.vmem [shape: f32[1,256], index: 4, kind: input, shape index: {}]
  %s5 = inlined_call_operand.vmem [shape: f32[1,256], index: 5, kind: input, shape index: {}]
  %s6 = inlined_call_operand.<no memory space> [shape: f32[1], index: 6, kind: input, shape index: {}]
  %s7 = inlined_call_operand.vmem [shape: f32[128,1], index: 7, kind: output, shape index: {}]
  %s8 = sld [smem:[#allocation0]]
  $region38: #{surrogate_forward.1} parent=0
    _
  %s10 = ssub.s32 1, %s8
  %s11 = scalar_select 0, %s10, %s8
  %12 = sst [smem:[#allocation2]] %s6
  // Predicated region
  $region2: #{surrogate_forward.1} parent=0 // pred_check
    _
  $region3: #{surrogate_forward.1} parent=0 // pred_check_branch
    %14 = sbr.rel (0) target = $region5
  $region4: #{surrogate_forward.1} parent=0 // pred_region
    _
  $region5: #{surrogate_forward.1} parent=0 // pred_fallthru
    _
  // Predicated region
  $region6: #{surrogate_forward.1} parent=0 // pred_check
    _
  $region7: #{surrogate_forward.1} parent=0 // pred_check_branch
    %16 = sbr.rel (0) target = $region9
  $region8: #{surrogate_forward.1} parent=0 // pred_region
    _
  $region9: #{surrogate_forward.1} parent=0 // pred_fallthru
    _
  // Predicated region
  $region10: #{surrogate_forward.1} parent=0 // pred_check
    _
  $region11: #{surrogate_forward.1} parent=0 // pred_check_branch
    %18 = sbr.rel (0) target = $region13
  $region12: #{surrogate_forward.1} parent=0 // pred_region
    _
  $region13: #{surrogate_forward.1} parent=0 // pred_fallthru
    _
  // Predicated region
  $region14: #{surrogate_forward.1} parent=0 // pred_check
    _
  $region15: #{surrogate_forward.1} parent=0 // pred_check_branch
    %20 = sbr.rel (0) target = $region17
  $region16: #{surrogate_forward.1} parent=0 // pred_region
    _
  $region17: #{surrogate_forward.1} parent=0 // pred_fallthru
    _
  // Predicated region
  $region18: #{surrogate_forward.1} parent=0 // pred_check
    _
  $region19: #{surrogate_forward.1} parent=0 // pred_check_branch
    %22 = sbr.rel (0) target = $region21
  $region20: #{surrogate_forward.1} parent=0 // pred_region
    _
  $region21: #{surrogate_forward.1} parent=0 // pred_fallthru
    _
  // Predicated region
  $region22: #{surrogate_forward.1} parent=0 // pred_check
    _
  $region23: #{surrogate_forward.1} parent=0 // pred_check_branch
    %24 = sbr.rel (0) target = $region25
  $region24: #{surrogate_forward.1} parent=0 // pred_region
    _
  $region25: #{surrogate_forward.1} parent=0 // pred_fallthru
    _
  // Predicated region
  $region26: #{surrogate_forward.1} parent=0 // pred_check
    _
  $region27: #{surrogate_forward.1} parent=0 // pred_check_branch
    %26 = sbr.rel (0) target = $region29
  $region28: #{surrogate_forward.1} parent=0 // pred_region
    _
  $region29: #{surrogate_forward.1} parent=0 // pred_fallthru
    _
  %v28 = vld [vmem:[%s0] sm:$0xff]
  %v29 = vld [vmem:[%s0 + $0x8] sm:$0xff]
  %v30 = vld [vmem:[%s0 + $0x10] sm:$0xff]
  %v31 = vld [vmem:[%s0 + $0x18] sm:$0xff]
  %v32 = vld [vmem:[%s0 + $0x20] sm:$0xff]
  %v33 = vld [vmem:[%s0 + $0x28] sm:$0xff]
  %v34 = vld [vmem:[%s0 + $0x30] sm:$0xff]
  %v35 = vld [vmem:[%s0 + $0x38] sm:$0xff]
  %v36 = vld [vmem:[%s0 + $0x40] sm:$0xff]
  %v37 = vld [vmem:[%s0 + $0x48] sm:$0xff]
  %v38 = vld [vmem:[%s0 + $0x50] sm:$0xff]
  %v39 = vld [vmem:[%s0 + $0x58] sm:$0xff]
  %v40 = vld [vmem:[%s0 + $0x60] sm:$0xff]
  %v41 = vld [vmem:[%s0 + $0x68] sm:$0xff]
  %v42 = vld [vmem:[%s0 + $0x70] sm:$0xff]
  %v43 = vld [vmem:[%s0 + $0x78] sm:$0xff]
  %v44 = vpack.c.bf16 %v29, %v28
  %v45 = vpack.c.bf16 %v31, %v30
  %v46 = vpack.c.bf16 %v33, %v32
  %v47 = vpack.c.bf16 %v35, %v34
  %v48 = vpack.c.bf16 %v37, %v36
  %v49 = vpack.c.bf16 %v39, %v38
  %v50 = vpack.c.bf16 %v41, %v40
  %v51 = vpack.c.bf16 %v43, %v42
  %v52 = vld [vmem:[%s1] sm:$0xff]
  %v53 = vld [vmem:[%s1 + $0x8] sm:$0xff]
  %v54 = vld [vmem:[%s1 + $0x10] sm:$0xff]
  %v55 = vld [vmem:[%s1 + $0x18] sm:$0xff]
  %v56 = vld [vmem:[%s1 + $0x20] sm:$0xff]
  %v57 = vld [vmem:[%s1 + $0x28] sm:$0xff]
  %v58 = vld [vmem:[%s1 + $0x30] sm:$0xff]
  %v59 = vld [vmem:[%s1 + $0x38] sm:$0xff]
  %v60 = vld [vmem:[%s2] sm:$0xf]
  %v62 = vlaneseq
  %v63 = vshrl.u32 %v62, 7
  %v64 = vsub.s32 0, %v63
  %v65 = vrot.slane %v60, %v64
  %v66 = vlaneseq
  %v67 = vshrl.u32 %v66, 7
  %v68 = vsub.s32 1, %v67
  %v69 = vrot.slane %v60, %v68
  %v70 = vlaneseq
  %v71 = vshrl.u32 %v70, 7
  %v72 = vsub.s32 2, %v71
  %v73 = vrot.slane %v60, %v72
  %v74 = vlaneseq
  %v75 = vshrl.u32 %v74, 7
  %v76 = vsub.s32 3, %v75
  %v77 = vrot.slane %v60, %v76
  %v90 = vunpack.c.l.b16 %v52
  %v91 = vunpack.c.h.b16 %v52
  %v92 = vunpack.c.l.b16 %v53
  %v93 = vunpack.c.h.b16 %v53
  %v94 = vunpack.c.l.b16 %v54
  %v95 = vunpack.c.h.b16 %v54
  %v96 = vunpack.c.l.b16 %v55
  %v97 = vunpack.c.h.b16 %v55
  %v98 = vunpack.c.l.b16 %v56
  %v99 = vunpack.c.h.b16 %v56
  %v100 = vunpack.c.l.b16 %v57
  %v101 = vunpack.c.h.b16 %v57
  %v102 = vunpack.c.l.b16 %v58
  %v103 = vunpack.c.h.b16 %v58
  %v104 = vunpack.c.l.b16 %v59
  %v105 = vunpack.c.h.b16 %v59
  %v106 = vpack.c.b16 %v94, %v90
  %v107 = vpack.c.b16 %v95, %v91
  %v108 = vpack.c.b16 %v96, %v92
  %v109 = vpack.c.b16 %v97, %v93
  %v110 = vpack.c.b16 %v102, %v98
  %v111 = vpack.c.b16 %v103, %v99
  %v112 = vpack.c.b16 %v104, %v100
  %v113 = vpack.c.b16 %v105, %v101
  %vm122 = vcmask 261120
  %v124 = vsel %vm122, %v44, 0
  %v127 = vsel %vm122, %v45, 0
  %v130 = vsel %vm122, %v46, 0
  %v133 = vsel %vm122, %v47, 0
  %v136 = vsel %vm122, %v48, 0
  %v139 = vsel %vm122, %v49, 0
  %v142 = vsel %vm122, %v50, 0
  %v145 = vsel %vm122, %v51, 0
  %147 = vmatprep.subr.bf16.mxu0 %v107
  %148 = vmatpush1.bf16.msra.mxu0 %v106
  %149 = vmatprep.subr.bf16.mxu0 %v111
  %150 = vmatpush1.bf16.msra.mxu0 %v110
  %151 = vmatprep.subr.bf16.mxu0 0
  %152 = vmatpush1.bf16.msra.mxu0 0
  %153 = vmatprep.subr.bf16.mxu0 0
  %154 = vmatpush1.bf16.msra.mxu0 0
  %155 = vmatprep.subr.bf16.mxu0 0
  %156 = vmatpush1.bf16.msra.mxu0 0
  %157 = vmatprep.subr.bf16.mxu0 0
  %158 = vmatpush1.bf16.msra.mxu0 0
  %159 = vmatprep.subr.bf16.mxu0 0
  %160 = vmatpush1.bf16.msra.mxu0 0
  %161 = vmatprep.subr.bf16.mxu0 0
  %162 = vmatpush1.bf16.msra.mxu0 0
  %163 = vmatprep.subr.bf16.mxu0 0
  %164 = vmatpush1.bf16.msra.mxu0 0
  %165 = vmatprep.subr.bf16.mxu0 0
  %166 = vmatpush1.bf16.msra.mxu0 0
  %167 = vmatprep.subr.bf16.mxu0 0
  %168 = vmatpush1.bf16.msra.mxu0 0
  %169 = vmatprep.subr.bf16.mxu0 0
  %170 = vmatpush1.bf16.msra.mxu0 0
  %171 = vmatprep.subr.bf16.mxu0 0
  %172 = vmatpush1.bf16.msra.mxu0 0
  %173 = vmatprep.subr.bf16.mxu0 0
  %174 = vmatpush1.bf16.msra.mxu0 0
  %175 = vmatprep.subr.bf16.mxu0 0
  %176 = vmatpush1.bf16.msra.mxu0 0
  %177 = vmatprep.subr.bf16.mxu0 0
  %178 = vmatpush1.bf16.msra.mxu0 0
  %179 = vmatprep.mubr.bf16.mxu0 0
  %180 = vmatmul.mubr.bf16.gmra.mrb[0].mxu0 %v124
  %v181 = vpop.f32.mrb[0].mxu0
  %v182 = vadd.f32 %v65, %v181
  %v183 = vpop.f32.mrb[0].mxu0
  %v184 = vadd.f32 %v69, %v183
  %v185 = vpop.f32.mrb[0].mxu0
  %v186 = vadd.f32 %v65, %v185
  %v187 = vpop.f32.mrb[0].mxu0
  %v188 = vadd.f32 %v69, %v187
  %189 = vmatprep.mubr.bf16.mxu0 0
  %190 = vmatmul.mubr.bf16.gmra.mrb[0].mxu0 %v127
  %v191 = vpop.f32.mrb[0].mxu0
  %v192 = vadd.f32 %v65, %v191
  %v193 = vpop.f32.mrb[0].mxu0
  %v194 = vadd.f32 %v69, %v193
  %v195 = vpop.f32.mrb[0].mxu0
  %v196 = vadd.f32 %v65, %v195
  %v197 = vpop.f32.mrb[0].mxu0
  %v198 = vadd.f32 %v69, %v197
  %199 = vmatprep.mubr.bf16.mxu0 0
  %200 = vmatmul.mubr.bf16.gmra.mrb[0].mxu0 %v130
  %v201 = vpop.f32.mrb[0].mxu0
  %v202 = vadd.f32 %v65, %v201
  %v203 = vpop.f32.mrb[0].mxu0
  %v204 = vadd.f32 %v69, %v203
  %v205 = vpop.f32.mrb[0].mxu0
  %v206 = vadd.f32 %v65, %v205
  %v207 = vpop.f32.mrb[0].mxu0
  %v208 = vadd.f32 %v69, %v207
  %209 = vmatprep.mubr.bf16.mxu0 0
  %210 = vmatmul.mubr.bf16.gmra.mrb[0].mxu0 %v133
  %v211 = vpop.f32.mrb[0].mxu0
  %v212 = vadd.f32 %v65, %v211
  %v213 = vpop.f32.mrb[0].mxu0
  %v214 = vadd.f32 %v69, %v213
  %v215 = vpop.f32.mrb[0].mxu0
  %v216 = vadd.f32 %v65, %v215
  %v217 = vpop.f32.mrb[0].mxu0
  %v218 = vadd.f32 %v69, %v217
  %219 = vmatprep.mubr.bf16.mxu0 0
  %220 = vmatmul.mubr.bf16.gmra.mrb[0].mxu0 %v136
  %v221 = vpop.f32.mrb[0].mxu0
  %v222 = vadd.f32 %v65, %v221
  %v223 = vpop.f32.mrb[0].mxu0
  %v224 = vadd.f32 %v69, %v223
  %v225 = vpop.f32.mrb[0].mxu0
  %v226 = vadd.f32 %v65, %v225
  %v227 = vpop.f32.mrb[0].mxu0
  %v228 = vadd.f32 %v69, %v227
  %229 = vmatprep.mubr.bf16.mxu0 0
  %230 = vmatmul.mubr.bf16.gmra.mrb[0].mxu0 %v139
  %v231 = vpop.f32.mrb[0].mxu0
  %v232 = vadd.f32 %v65, %v231
  %v233 = vpop.f32.mrb[0].mxu0
  %v234 = vadd.f32 %v69, %v233
  %v235 = vpop.f32.mrb[0].mxu0
  %v236 = vadd.f32 %v65, %v235
  %v237 = vpop.f32.mrb[0].mxu0
  %v238 = vadd.f32 %v69, %v237
  %239 = vmatprep.mubr.bf16.mxu0 0
  %240 = vmatmul.mubr.bf16.gmra.mrb[0].mxu0 %v142
  %v241 = vpop.f32.mrb[0].mxu0
  %v242 = vadd.f32 %v65, %v241
  %v243 = vpop.f32.mrb[0].mxu0
  %v244 = vadd.f32 %v69, %v243
  %v245 = vpop.f32.mrb[0].mxu0
  %v246 = vadd.f32 %v65, %v245
  %v247 = vpop.f32.mrb[0].mxu0
  %v248 = vadd.f32 %v69, %v247
  %249 = vmatprep.mubr.bf16.mxu0 0
  %250 = vmatmul.mubr.bf16.gmra.mrb[0].mxu0 %v145
  %v251 = vpop.f32.mrb[0].mxu0
  %v252 = vadd.f32 %v65, %v251
  %v253 = vpop.f32.mrb[0].mxu0
  %v254 = vadd.f32 %v69, %v253
  %v255 = vpop.f32.mrb[0].mxu0
  %v256 = vadd.f32 %v65, %v255
  %v257 = vpop.f32.mrb[0].mxu0
  %v258 = vadd.f32 %v69, %v257
  %259 = vdwg.mxu0
  %260 = vmatprep.subr.bf16.mxu0 %v109
  %261 = vmatpush1.bf16.msra.mxu0 %v108
  %262 = vmatprep.subr.bf16.mxu0 %v113
  %263 = vmatpush1.bf16.msra.mxu0 %v112
  %264 = vmatprep.subr.bf16.mxu0 0
  %265 = vmatpush1.bf16.msra.mxu0 0
  %266 = vmatprep.subr.bf16.mxu0 0
  %267 = vmatpush1.bf16.msra.mxu0 0
  %268 = vmatprep.subr.bf16.mxu0 0
  %269 = vmatpush1.bf16.msra.mxu0 0
  %270 = vmatprep.subr.bf16.mxu0 0
  %271 = vmatpush1.bf16.msra.mxu0 0
  %272 = vmatprep.subr.bf16.mxu0 0
  %273 = vmatpush1.bf16.msra.mxu0 0
  %274 = vmatprep.subr.bf16.mxu0 0
  %275 = vmatpush1.bf16.msra.mxu0 0
  %276 = vmatprep.subr.bf16.mxu0 0
  %277 = vmatpush1.bf16.msra.mxu0 0
  %278 = vmatprep.subr.bf16.mxu0 0
  %279 = vmatpush1.bf16.msra.mxu0 0
  %280 = vmatprep.subr.bf16.mxu0 0
  %281 = vmatpush1.bf16.msra.mxu0 0
  %282 = vmatprep.subr.bf16.mxu0 0
  %283 = vmatpush1.bf16.msra.mxu0 0
  %284 = vmatprep.subr.bf16.mxu0 0
  %285 = vmatpush1.bf16.msra.mxu0 0
  %286 = vmatprep.subr.bf16.mxu0 0
  %287 = vmatpush1.bf16.msra.mxu0 0
  %288 = vmatprep.subr.bf16.mxu0 0
  %289 = vmatpush1.bf16.msra.mxu0 0
  %290 = vmatprep.subr.bf16.mxu0 0
  %291 = vmatpush1.bf16.msra.mxu0 0
  %292 = vmatprep.mubr.bf16.mxu0 0
  %293 = vmatmul.mubr.bf16.gmra.mrb[0].mxu0 %v124
  %v294 = vpop.f32.mrb[0].mxu0
  %v295 = vadd.f32 %v73, %v294
  %v296 = vpop.f32.mrb[0].mxu0
  %v297 = vadd.f32 %v77, %v296
  %v298 = vpop.f32.mrb[0].mxu0
  %v299 = vadd.f32 %v73, %v298
  %v300 = vpop.f32.mrb[0].mxu0
  %v301 = vadd.f32 %v77, %v300
  %302 = vmatprep.mubr.bf16.mxu0 0
  %303 = vmatmul.mubr.bf16.gmra.mrb[0].mxu0 %v127
  %v304 = vpop.f32.mrb[0].mxu0
  %v305 = vadd.f32 %v73, %v304
  %v306 = vpop.f32.mrb[0].mxu0
  %v307 = vadd.f32 %v77, %v306
  %v308 = vpop.f32.mrb[0].mxu0
  %v309 = vadd.f32 %v73, %v308
  %v310 = vpop.f32.mrb[0].mxu0
  %v311 = vadd.f32 %v77, %v310
  %312 = vmatprep.mubr.bf16.mxu0 0
  %313 = vmatmul.mubr.bf16.gmra.mrb[0].mxu0 %v130
  %v314 = vpop.f32.mrb[0].mxu0
  %v315 = vadd.f32 %v73, %v314
  %v316 = vpop.f32.mrb[0].mxu0
  %v317 = vadd.f32 %v77, %v316
  %v318 = vpop.f32.mrb[0].mxu0
  %v319 = vadd.f32 %v73, %v318
  %v320 = vpop.f32.mrb[0].mxu0
  %v321 = vadd.f32 %v77, %v320
  %322 = vmatprep.mubr.bf16.mxu0 0
  %323 = vmatmul.mubr.bf16.gmra.mrb[0].mxu0 %v133
  %v324 = vpop.f32.mrb[0].mxu0
  %v325 = vadd.f32 %v73, %v324
  %v326 = vpop.f32.mrb[0].mxu0
  %v327 = vadd.f32 %v77, %v326
  %v328 = vpop.f32.mrb[0].mxu0
  %v329 = vadd.f32 %v73, %v328
  %v330 = vpop.f32.mrb[0].mxu0
  %v331 = vadd.f32 %v77, %v330
  %332 = vmatprep.mubr.bf16.mxu0 0
  %333 = vmatmul.mubr.bf16.gmra.mrb[0].mxu0 %v136
  %v334 = vpop.f32.mrb[0].mxu0
  %v335 = vadd.f32 %v73, %v334
  %v336 = vpop.f32.mrb[0].mxu0
  %v337 = vadd.f32 %v77, %v336
  %v338 = vpop.f32.mrb[0].mxu0
  %v339 = vadd.f32 %v73, %v338
  %v340 = vpop.f32.mrb[0].mxu0
  %v341 = vadd.f32 %v77, %v340
  %342 = vmatprep.mubr.bf16.mxu0 0
  %343 = vmatmul.mubr.bf16.gmra.mrb[0].mxu0 %v139
  %v344 = vpop.f32.mrb[0].mxu0
  %v345 = vadd.f32 %v73, %v344
  %v346 = vpop.f32.mrb[0].mxu0
  %v347 = vadd.f32 %v77, %v346
  %v348 = vpop.f32.mrb[0].mxu0
  %v349 = vadd.f32 %v73, %v348
  %v350 = vpop.f32.mrb[0].mxu0
  %v351 = vadd.f32 %v77, %v350
  %352 = vmatprep.mubr.bf16.mxu0 0
  %353 = vmatmul.mubr.bf16.gmra.mrb[0].mxu0 %v142
  %v354 = vpop.f32.mrb[0].mxu0
  %v355 = vadd.f32 %v73, %v354
  %v356 = vpop.f32.mrb[0].mxu0
  %v357 = vadd.f32 %v77, %v356
  %v358 = vpop.f32.mrb[0].mxu0
  %v359 = vadd.f32 %v73, %v358
  %v360 = vpop.f32.mrb[0].mxu0
  %v361 = vadd.f32 %v77, %v360
  %362 = vmatprep.mubr.bf16.mxu0 0
  %363 = vmatmul.mubr.bf16.gmra.mrb[0].mxu0 %v145
  %v364 = vpop.f32.mrb[0].mxu0
  %v365 = vadd.f32 %v73, %v364
  %v366 = vpop.f32.mrb[0].mxu0
  %v367 = vadd.f32 %v77, %v366
  %v368 = vpop.f32.mrb[0].mxu0
  %v369 = vadd.f32 %v73, %v368
  %v370 = vpop.f32.mrb[0].mxu0
  %v371 = vadd.f32 %v77, %v370
  %372 = vdwg.mxu0
  %v373 = vmax.f32 %v182, 0.0
  %v374 = vmax.f32 %v184, 0.0
  %v375 = vmax.f32 %v295, 0.0
  %v376 = vmax.f32 %v297, 0.0
  %v377 = vmax.f32 %v186, 0.0
  %v378 = vmax.f32 %v188, 0.0
  %v379 = vmax.f32 %v299, 0.0
  %v380 = vmax.f32 %v301, 0.0
  %v381 = vmax.f32 %v192, 0.0
  %v382 = vmax.f32 %v194, 0.0
  %v383 = vmax.f32 %v305, 0.0
  %v384 = vmax.f32 %v307, 0.0
  %v385 = vmax.f32 %v196, 0.0
  %v386 = vmax.f32 %v198, 0.0
  %v387 = vmax.f32 %v309, 0.0
  %v388 = vmax.f32 %v311, 0.0
  %v389 = vmax.f32 %v202, 0.0
  %v390 = vmax.f32 %v204, 0.0
  %v391 = vmax.f32 %v315, 0.0
  %v392 = vmax.f32 %v317, 0.0
  %v393 = vmax.f32 %v206, 0.0
  %v394 = vmax.f32 %v208, 0.0
  %v395 = vmax.f32 %v319, 0.0
  %v396 = vmax.f32 %v321, 0.0
  %v397 = vmax.f32 %v212, 0.0
  %v398 = vmax.f32 %v214, 0.0
  %v399 = vmax.f32 %v325, 0.0
  %v400 = vmax.f32 %v327, 0.0
  %v401 = vmax.f32 %v216, 0.0
  %v402 = vmax.f32 %v218, 0.0
  %v403 = vmax.f32 %v329, 0.0
  %v404 = vmax.f32 %v331, 0.0
  %v405 = vmax.f32 %v222, 0.0
  %v406 = vmax.f32 %v224, 0.0
  %v407 = vmax.f32 %v335, 0.0
  %v408 = vmax.f32 %v337, 0.0
  %v409 = vmax.f32 %v226, 0.0
  %v410 = vmax.f32 %v228, 0.0
  %v411 = vmax.f32 %v339, 0.0
  %v412 = vmax.f32 %v341, 0.0
  %v413 = vmax.f32 %v232, 0.0
  %v414 = vmax.f32 %v234, 0.0
  %v415 = vmax.f32 %v345, 0.0
  %v416 = vmax.f32 %v347, 0.0
  %v417 = vmax.f32 %v236, 0.0
  %v418 = vmax.f32 %v238, 0.0
  %v419 = vmax.f32 %v349, 0.0
  %v420 = vmax.f32 %v351, 0.0
  %v421 = vmax.f32 %v242, 0.0
  %v422 = vmax.f32 %v244, 0.0
  %v423 = vmax.f32 %v355, 0.0
  %v424 = vmax.f32 %v357, 0.0
  %v425 = vmax.f32 %v246, 0.0
  %v426 = vmax.f32 %v248, 0.0
  %v427 = vmax.f32 %v359, 0.0
  %v428 = vmax.f32 %v361, 0.0
  %v429 = vmax.f32 %v252, 0.0
  %v430 = vmax.f32 %v254, 0.0
  %v431 = vmax.f32 %v365, 0.0
  %v432 = vmax.f32 %v367, 0.0
  %v433 = vmax.f32 %v256, 0.0
  %v434 = vmax.f32 %v258, 0.0
  %v435 = vmax.f32 %v369, 0.0
  %v436 = vmax.f32 %v371, 0.0
  %v437 = vpack.c.bf16 %v377, %v373
  %v438 = vpack.c.bf16 %v378, %v374
  %v439 = vpack.c.bf16 %v379, %v375
  %v440 = vpack.c.bf16 %v380, %v376
  %v441 = vpack.c.bf16 %v385, %v381
  %v442 = vpack.c.bf16 %v386, %v382
  %v443 = vpack.c.bf16 %v387, %v383
  %v444 = vpack.c.bf16 %v388, %v384
  %v445 = vpack.c.bf16 %v393, %v389
  %v446 = vpack.c.bf16 %v394, %v390
  %v447 = vpack.c.bf16 %v395, %v391
  %v448 = vpack.c.bf16 %v396, %v392
  %v449 = vpack.c.bf16 %v401, %v397
  %v450 = vpack.c.bf16 %v402, %v398
  %v451 = vpack.c.bf16 %v403, %v399
  %v452 = vpack.c.bf16 %v404, %v400
  %v453 = vpack.c.bf16 %v409, %v405
  %v454 = vpack.c.bf16 %v410, %v406
  %v455 = vpack.c.bf16 %v411, %v407
  %v456 = vpack.c.bf16 %v412, %v408
  %v457 = vpack.c.bf16 %v417, %v413
  %v458 = vpack.c.bf16 %v418, %v414
  %v459 = vpack.c.bf16 %v419, %v415
  %v460 = vpack.c.bf16 %v420, %v416
  %v461 = vpack.c.bf16 %v425, %v421
  %v462 = vpack.c.bf16 %v426, %v422
  %v463 = vpack.c.bf16 %v427, %v423
  %v464 = vpack.c.bf16 %v428, %v424
  %v465 = vpack.c.bf16 %v433, %v429
  %v466 = vpack.c.bf16 %v434, %v430
  %v467 = vpack.c.bf16 %v435, %v431
  %v468 = vpack.c.bf16 %v436, %v432
  %v469 = vld [vmem:[%s3] sm:$0xff]
  %v470 = vld [vmem:[%s3 + $0x8] sm:$0xff]
  %v471 = vld [vmem:[%s3 + $0x10] sm:$0xff]
  %v472 = vld [vmem:[%s3 + $0x18] sm:$0xff]
  %v473 = vld [vmem:[%s3 + $0x20] sm:$0xff]
  %v474 = vld [vmem:[%s3 + $0x28] sm:$0xff]
  %v475 = vld [vmem:[%s3 + $0x30] sm:$0xff]
  %v476 = vld [vmem:[%s3 + $0x38] sm:$0xff]
  %v477 = vld [vmem:[%s3 + $0x40] sm:$0xff]
  %v478 = vld [vmem:[%s3 + $0x48] sm:$0xff]
  %v479 = vld [vmem:[%s3 + $0x50] sm:$0xff]
  %v480 = vld [vmem:[%s3 + $0x58] sm:$0xff]
  %v481 = vld [vmem:[%s3 + $0x60] sm:$0xff]
  %v482 = vld [vmem:[%s3 + $0x68] sm:$0xff]
  %v483 = vld [vmem:[%s3 + $0x70] sm:$0xff]
  %v484 = vld [vmem:[%s3 + $0x78] sm:$0xff]
  %v485 = vld [vmem:[%s3 + $0x80] sm:$0xff]
  %v486 = vld [vmem:[%s3 + $0x88] sm:$0xff]
  %v487 = vld [vmem:[%s3 + $0x90] sm:$0xff]
  %v488 = vld [vmem:[%s3 + $0x98] sm:$0xff]
  %v489 = vld [vmem:[%s3 + $0xa0] sm:$0xff]
  %v490 = vld [vmem:[%s3 + $0xa8] sm:$0xff]
  %v491 = vld [vmem:[%s3 + $0xb0] sm:$0xff]
  %v492 = vld [vmem:[%s3 + $0xb8] sm:$0xff]
  %v493 = vld [vmem:[%s3 + $0xc0] sm:$0xff]
  %v494 = vld [vmem:[%s3 + $0xc8] sm:$0xff]
  %v495 = vld [vmem:[%s3 + $0xd0] sm:$0xff]
  %v496 = vld [vmem:[%s3 + $0xd8] sm:$0xff]
  %v497 = vld [vmem:[%s3 + $0xe0] sm:$0xff]
  %v498 = vld [vmem:[%s3 + $0xe8] sm:$0xff]
  %v499 = vld [vmem:[%s3 + $0xf0] sm:$0xff]
  %v500 = vld [vmem:[%s3 + $0xf8] sm:$0xff]
  %v501 = vld [vmem:[%s3 + $0x100] sm:$0xff]
  %v502 = vld [vmem:[%s3 + $0x108] sm:$0xff]
  %v503 = vld [vmem:[%s3 + $0x110] sm:$0xff]
  %v504 = vld [vmem:[%s3 + $0x118] sm:$0xff]
  %v505 = vld [vmem:[%s3 + $0x120] sm:$0xff]
  %v506 = vld [vmem:[%s3 + $0x128] sm:$0xff]
  %v507 = vld [vmem:[%s3 + $0x130] sm:$0xff]
  %v508 = vld [vmem:[%s3 + $0x138] sm:$0xff]
  %v509 = vld [vmem:[%s3 + $0x140] sm:$0xff]
  %v510 = vld [vmem:[%s3 + $0x148] sm:$0xff]
  %v511 = vld [vmem:[%s3 + $0x150] sm:$0xff]
  %v512 = vld [vmem:[%s3 + $0x158] sm:$0xff]
  %v513 = vld [vmem:[%s3 + $0x160] sm:$0xff]
  %v514 = vld [vmem:[%s3 + $0x168] sm:$0xff]
  %v515 = vld [vmem:[%s3 + $0x170] sm:$0xff]
  %v516 = vld [vmem:[%s3 + $0x178] sm:$0xff]
  %v517 = vld [vmem:[%s3 + $0x180] sm:$0xff]
  %v518 = vld [vmem:[%s3 + $0x188] sm:$0xff]
  %v519 = vld [vmem:[%s3 + $0x190] sm:$0xff]
  %v520 = vld [vmem:[%s3 + $0x198] sm:$0xff]
  %v521 = vld [vmem:[%s3 + $0x1a0] sm:$0xff]
  %v522 = vld [vmem:[%s3 + $0x1a8] sm:$0xff]
  %v523 = vld [vmem:[%s3 + $0x1b0] sm:$0xff]
  %v524 = vld [vmem:[%s3 + $0x1b8] sm:$0xff]
  %v525 = vld [vmem:[%s3 + $0x1c0] sm:$0xff]
  %v526 = vld [vmem:[%s3 + $0x1c8] sm:$0xff]
  %v527 = vld [vmem:[%s3 + $0x1d0] sm:$0xff]
  %v528 = vld [vmem:[%s3 + $0x1d8] sm:$0xff]
  %v529 = vld [vmem:[%s3 + $0x1e0] sm:$0xff]
  %v530 = vld [vmem:[%s3 + $0x1e8] sm:$0xff]
  %v531 = vld [vmem:[%s3 + $0x1f0] sm:$0xff]
  %v532 = vld [vmem:[%s3 + $0x1f8] sm:$0xff]
  %v533 = vld [vmem:[%s4] sm:$0x3]
  %v535 = vlaneseq
  %v536 = vshrl.u32 %v535, 7
  %v537 = vsub.s32 0, %v536
  %v538 = vrot.slane %v533, %v537
  %v539 = vlaneseq
  %v540 = vshrl.u32 %v539, 7
  %v541 = vsub.s32 1, %v540
  %v542 = vrot.slane %v533, %v541
  %v609 = vunpack.c.l.b16 %v469
  %v610 = vunpack.c.h.b16 %v469
  %v611 = vunpack.c.l.b16 %v470
  %v612 = vunpack.c.h.b16 %v470
  %v613 = vunpack.c.l.b16 %v471
  %v614 = vunpack.c.h.b16 %v471
  %v615 = vunpack.c.l.b16 %v472
  %v616 = vunpack.c.h.b16 %v472
  %v617 = vunpack.c.l.b16 %v473
  %v618 = vunpack.c.h.b16 %v473
  %v619 = vunpack.c.l.b16 %v474
  %v620 = vunpack.c.h.b16 %v474
  %v621 = vunpack.c.l.b16 %v475
  %v622 = vunpack.c.h.b16 %v475
  %v623 = vunpack.c.l.b16 %v476
  %v624 = vunpack.c.h.b16 %v476
  %v625 = vunpack.c.l.b16 %v477
  %v626 = vunpack.c.h.b16 %v477
  %v627 = vunpack.c.l.b16 %v478
  %v628 = vunpack.c.h.b16 %v478
  %v629 = vunpack.c.l.b16 %v479
  %v630 = vunpack.c.h.b16 %v479
  %v631 = vunpack.c.l.b16 %v480
  %v632 = vunpack.c.h.b16 %v480
  %v633 = vunpack.c.l.b16 %v481
  %v634 = vunpack.c.h.b16 %v481
  %v635 = vunpack.c.l.b16 %v482
  %v636 = vunpack.c.h.b16 %v482
  %v637 = vunpack.c.l.b16 %v483
  %v638 = vunpack.c.h.b16 %v483
  %v639 = vunpack.c.l.b16 %v484
  %v640 = vunpack.c.h.b16 %v484
  %v641 = vunpack.c.l.b16 %v485
  %v642 = vunpack.c.h.b16 %v485
  %v643 = vunpack.c.l.b16 %v486
  %v644 = vunpack.c.h.b16 %v486
  %v645 = vunpack.c.l.b16 %v487
  %v646 = vunpack.c.h.b16 %v487
  %v647 = vunpack.c.l.b16 %v488
  %v648 = vunpack.c.h.b16 %v488
  %v649 = vunpack.c.l.b16 %v489
  %v650 = vunpack.c.h.b16 %v489
  %v651 = vunpack.c.l.b16 %v490
  %v652 = vunpack.c.h.b16 %v490
  %v653 = vunpack.c.l.b16 %v491
  %v654 = vunpack.c.h.b16 %v491
  %v655 = vunpack.c.l.b16 %v492
  %v656 = vunpack.c.h.b16 %v492
  %v657 = vunpack.c.l.b16 %v493
  %v658 = vunpack.c.h.b16 %v493
  %v659 = vunpack.c.l.b16 %v494
  %v660 = vunpack.c.h.b16 %v494
  %v661 = vunpack.c.l.b16 %v495
  %v662 = vunpack.c.h.b16 %v495
  %v663 = vunpack.c.l.b16 %v496
  %v664 = vunpack.c.h.b16 %v496
  %v665 = vunpack.c.l.b16 %v497
  %v666 = vunpack.c.h.b16 %v497
  %v667 = vunpack.c.l.b16 %v498
  %v668 = vunpack.c.h.b16 %v498
  %v669 = vunpack.c.l.b16 %v499
  %v670 = vunpack.c.h.b16 %v499
  %v671 = vunpack.c.l.b16 %v500
  %v672 = vunpack.c.h.b16 %v500
  %v673 = vunpack.c.l.b16 %v501
  %v674 = vunpack.c.h.b16 %v501
  %v675 = vunpack.c.l.b16 %v502
  %v676 = vunpack.c.h.b16 %v502
  %v677 = vunpack.c.l.b16 %v503
  %v678 = vunpack.c.h.b16 %v503
  %v679 = vunpack.c.l.b16 %v504
  %v680 = vunpack.c.h.b16 %v504
  %v681 = vunpack.c.l.b16 %v505
  %v682 = vunpack.c.h.b16 %v505
  %v683 = vunpack.c.l.b16 %v506
  %v684 = vunpack.c.h.b16 %v506
  %v685 = vunpack.c.l.b16 %v507
  %v686 = vunpack.c.h.b16 %v507
  %v687 = vunpack.c.l.b16 %v508
  %v688 = vunpack.c.h.b16 %v508
  %v689 = vunpack.c.l.b16 %v509
  %v690 = vunpack.c.h.b16 %v509
  %v691 = vunpack.c.l.b16 %v510
  %v692 = vunpack.c.h.b16 %v510
  %v693 = vunpack.c.l.b16 %v511
  %v694 = vunpack.c.h.b16 %v511
  %v695 = vunpack.c.l.b16 %v512
  %v696 = vunpack.c.h.b16 %v512
  %v697 = vunpack.c.l.b16 %v513
  %v698 = vunpack.c.h.b16 %v513
  %v699 = vunpack.c.l.b16 %v514
  %v700 = vunpack.c.h.b16 %v514
  %v701 = vunpack.c.l.b16 %v515
  %v702 = vunpack.c.h.b16 %v515
  %v703 = vunpack.c.l.b16 %v516
  %v704 = vunpack.c.h.b16 %v516
  %v705 = vunpack.c.l.b16 %v517
  %v706 = vunpack.c.h.b16 %v517
  %v707 = vunpack.c.l.b16 %v518
  %v708 = vunpack.c.h.b16 %v518
  %v709 = vunpack.c.l.b16 %v519
  %v710 = vunpack.c.h.b16 %v519
  %v711 = vunpack.c.l.b16 %v520
  %v712 = vunpack.c.h.b16 %v520
  %v713 = vunpack.c.l.b16 %v521
  %v714 = vunpack.c.h.b16 %v521
  %v715 = vunpack.c.l.b16 %v522
  %v716 = vunpack.c.h.b16 %v522
  %v717 = vunpack.c.l.b16 %v523
  %v718 = vunpack.c.h.b16 %v523
  %v719 = vunpack.c.l.b16 %v524
  %v720 = vunpack.c.h.b16 %v524
  %v721 = vunpack.c.l.b16 %v525
  %v722 = vunpack.c.h.b16 %v525
  %v723 = vunpack.c.l.b16 %v526
  %v724 = vunpack.c.h.b16 %v526
  %v725 = vunpack.c.l.b16 %v527
  %v726 = vunpack.c.h.b16 %v527
  %v727 = vunpack.c.l.b16 %v528
  %v728 = vunpack.c.h.b16 %v528
  %v729 = vunpack.c.l.b16 %v529
  %v730 = vunpack.c.h.b16 %v529
  %v731 = vunpack.c.l.b16 %v530
  %v732 = vunpack.c.h.b16 %v530
  %v733 = vunpack.c.l.b16 %v531
  %v734 = vunpack.c.h.b16 %v531
  %v735 = vunpack.c.l.b16 %v532
  %v736 = vunpack.c.h.b16 %v532
  %v737 = vpack.c.b16 %v611, %v609
  %v738 = vpack.c.b16 %v612, %v610
  %v739 = vpack.c.b16 %v615, %v613
  %v740 = vpack.c.b16 %v616, %v614
  %v741 = vpack.c.b16 %v619, %v617
  %v742 = vpack.c.b16 %v620, %v618
  %v743 = vpack.c.b16 %v623, %v621
  %v744 = vpack.c.b16 %v624, %v622
  %v745 = vpack.c.b16 %v627, %v625
  %v746 = vpack.c.b16 %v628, %v626
  %v747 = vpack.c.b16 %v631, %v629
  %v748 = vpack.c.b16 %v632, %v630
  %v749 = vpack.c.b16 %v635, %v633
  %v750 = vpack.c.b16 %v636, %v634
  %v751 = vpack.c.b16 %v639, %v637
  %v752 = vpack.c.b16 %v640, %v638
  %v753 = vpack.c.b16 %v643, %v641
  %v754 = vpack.c.b16 %v644, %v642
  %v755 = vpack.c.b16 %v647, %v645
  %v756 = vpack.c.b16 %v648, %v646
  %v757 = vpack.c.b16 %v651, %v649
  %v758 = vpack.c.b16 %v652, %v650
  %v759 = vpack.c.b16 %v655, %v653
  %v760 = vpack.c.b16 %v656, %v654
  %v761 = vpack.c.b16 %v659, %v657
  %v762 = vpack.c.b16 %v660, %v658
  %v763 = vpack.c.b16 %v663, %v661
  %v764 = vpack.c.b16 %v664, %v662
  %v765 = vpack.c.b16 %v667, %v665
  %v766 = vpack.c.b16 %v668, %v666
  %v767 = vpack.c.b16 %v671, %v669
  %v768 = vpack.c.b16 %v672, %v670
  %v769 = vpack.c.b16 %v675, %v673
  %v770 = vpack.c.b16 %v676, %v674
  %v771 = vpack.c.b16 %v679, %v677
  %v772 = vpack.c.b16 %v680, %v678
  %v773 = vpack.c.b16 %v683, %v681
  %v774 = vpack.c.b16 %v684, %v682
  %v775 = vpack.c.b16 %v687, %v685
  %v776 = vpack.c.b16 %v688, %v686
  %v777 = vpack.c.b16 %v691, %v689
  %v778 = vpack.c.b16 %v692, %v690
  %v779 = vpack.c.b16 %v695, %v693
  %v780 = vpack.c.b16 %v696, %v694
  %v781 = vpack.c.b16 %v699, %v697
  %v782 = vpack.c.b16 %v700, %v698
  %v783 = vpack.c.b16 %v703, %v701
  %v784 = vpack.c.b16 %v704, %v702
  %v785 = vpack.c.b16 %v707, %v705
  %v786 = vpack.c.b16 %v708, %v706
  %v787 = vpack.c.b16 %v711, %v709
  %v788 = vpack.c.b16 %v712, %v710
  %v789 = vpack.c.b16 %v715, %v713
  %v790 = vpack.c.b16 %v716, %v714
  %v791 = vpack.c.b16 %v719, %v717
  %v792 = vpack.c.b16 %v720, %v718
  %v793 = vpack.c.b16 %v723, %v721
  %v794 = vpack.c.b16 %v724, %v722
  %v795 = vpack.c.b16 %v727, %v725
  %v796 = vpack.c.b16 %v728, %v726
  %v797 = vpack.c.b16 %v731, %v729
  %v798 = vpack.c.b16 %v732, %v730
  %v799 = vpack.c.b16 %v735, %v733
  %v800 = vpack.c.b16 %v736, %v734
  %865 = vmatprep.subr.bf16.mxu0 %v738
  %866 = vmatpush1.bf16.msra.mxu0 %v737
  %867 = vmatprep.subr.bf16.mxu0 %v740
  %868 = vmatpush1.bf16.msra.mxu0 %v739
  %869 = vmatprep.subr.bf16.mxu0 %v742
  %870 = vmatpush1.bf16.msra.mxu0 %v741
  %871 = vmatprep.subr.bf16.mxu0 %v744
  %872 = vmatpush1.bf16.msra.mxu0 %v743
  %873 = vmatprep.subr.bf16.mxu0 %v746
  %874 = vmatpush1.bf16.msra.mxu0 %v745
  %875 = vmatprep.subr.bf16.mxu0 %v748
  %876 = vmatpush1.bf16.msra.mxu0 %v747
  %877 = vmatprep.subr.bf16.mxu0 %v750
  %878 = vmatpush1.bf16.msra.mxu0 %v749
  %879 = vmatprep.subr.bf16.mxu0 %v752
  %880 = vmatpush1.bf16.msra.mxu0 %v751
  %881 = vmatprep.subr.bf16.mxu0 %v754
  %882 = vmatpush1.bf16.msra.mxu0 %v753
  %883 = vmatprep.subr.bf16.mxu0 %v756
  %884 = vmatpush1.bf16.msra.mxu0 %v755
  %885 = vmatprep.subr.bf16.mxu0 %v758
  %886 = vmatpush1.bf16.msra.mxu0 %v757
  %887 = vmatprep.subr.bf16.mxu0 %v760
  %888 = vmatpush1.bf16.msra.mxu0 %v759
  %889 = vmatprep.subr.bf16.mxu0 %v762
  %890 = vmatpush1.bf16.msra.mxu0 %v761
  %891 = vmatprep.subr.bf16.mxu0 %v764
  %892 = vmatpush1.bf16.msra.mxu0 %v763
  %893 = vmatprep.subr.bf16.mxu0 %v766
  %894 = vmatpush1.bf16.msra.mxu0 %v765
  %895 = vmatprep.subr.bf16.mxu0 %v768
  %896 = vmatpush1.bf16.msra.mxu0 %v767
  %897 = vmatprep.mubr.bf16.mxu0 %v438
  %898 = vmatmul.mubr.bf16.gmra.mrb[0].mxu0 %v437
  %v899 = vpop.f32.mrb[0].mxu0
  %v900 = vadd.f32 %v538, %v899
  %v901 = vpop.f32.mrb[0].mxu0
  %v902 = vadd.f32 %v542, %v901
  %v903 = vpop.f32.mrb[0].mxu0
  %v904 = vadd.f32 %v538, %v903
  %v905 = vpop.f32.mrb[0].mxu0
  %v906 = vadd.f32 %v542, %v905
  %907 = vmatprep.mubr.bf16.mxu0 %v442
  %908 = vmatmul.mubr.bf16.gmra.mrb[0].mxu0 %v441
  %v909 = vpop.f32.mrb[0].mxu0
  %v910 = vadd.f32 %v538, %v909
  %v911 = vpop.f32.mrb[0].mxu0
  %v912 = vadd.f32 %v542, %v911
  %v913 = vpop.f32.mrb[0].mxu0
  %v914 = vadd.f32 %v538, %v913
  %v915 = vpop.f32.mrb[0].mxu0
  %v916 = vadd.f32 %v542, %v915
  %917 = vmatprep.mubr.bf16.mxu0 %v446
  %918 = vmatmul.mubr.bf16.gmra.mrb[0].mxu0 %v445
  %v919 = vpop.f32.mrb[0].mxu0
  %v920 = vadd.f32 %v538, %v919
  %v921 = vpop.f32.mrb[0].mxu0
  %v922 = vadd.f32 %v542, %v921
  %v923 = vpop.f32.mrb[0].mxu0
  %v924 = vadd.f32 %v538, %v923
  %v925 = vpop.f32.mrb[0].mxu0
  %v926 = vadd.f32 %v542, %v925
  %927 = vmatprep.mubr.bf16.mxu0 %v450
  %928 = vmatmul.mubr.bf16.gmra.mrb[0].mxu0 %v449
  %v929 = vpop.f32.mrb[0].mxu0
  %v930 = vadd.f32 %v538, %v929
  %v931 = vpop.f32.mrb[0].mxu0
  %v932 = vadd.f32 %v542, %v931
  %v933 = vpop.f32.mrb[0].mxu0
  %v934 = vadd.f32 %v538, %v933
  %v935 = vpop.f32.mrb[0].mxu0
  %v936 = vadd.f32 %v542, %v935
  %937 = vmatprep.mubr.bf16.mxu0 %v454
  %938 = vmatmul.mubr.bf16.gmra.mrb[0].mxu0 %v453
  %v939 = vpop.f32.mrb[0].mxu0
  %v940 = vadd.f32 %v538, %v939
  %v941 = vpop.f32.mrb[0].mxu0
  %v942 = vadd.f32 %v542, %v941
  %v943 = vpop.f32.mrb[0].mxu0
  %v944 = vadd.f32 %v538, %v943
  %v945 = vpop.f32.mrb[0].mxu0
  %v946 = vadd.f32 %v542, %v945
  %947 = vmatprep.mubr.bf16.mxu0 %v458
  %948 = vmatmul.mubr.bf16.gmra.mrb[0].mxu0 %v457
  %v949 = vpop.f32.mrb[0].mxu0
  %v950 = vadd.f32 %v538, %v949
  %v951 = vpop.f32.mrb[0].mxu0
  %v952 = vadd.f32 %v542, %v951
  %v953 = vpop.f32.mrb[0].mxu0
  %v954 = vadd.f32 %v538, %v953
  %v955 = vpop.f32.mrb[0].mxu0
  %v956 = vadd.f32 %v542, %v955
  %957 = vmatprep.mubr.bf16.mxu0 %v462
  %958 = vmatmul.mubr.bf16.gmra.mrb[0].mxu0 %v461
  %v959 = vpop.f32.mrb[0].mxu0
  %v960 = vadd.f32 %v538, %v959
  %v961 = vpop.f32.mrb[0].mxu0
  %v962 = vadd.f32 %v542, %v961
  %v963 = vpop.f32.mrb[0].mxu0
  %v964 = vadd.f32 %v538, %v963
  %v965 = vpop.f32.mrb[0].mxu0
  %v966 = vadd.f32 %v542, %v965
  %967 = vmatprep.mubr.bf16.mxu0 %v466
  %968 = vmatmul.mubr.bf16.gmra.mrb[0].mxu0 %v465
  %v969 = vpop.f32.mrb[0].mxu0
  %v970 = vadd.f32 %v538, %v969
  %v971 = vpop.f32.mrb[0].mxu0
  %v972 = vadd.f32 %v542, %v971
  %v973 = vpop.f32.mrb[0].mxu0
  %v974 = vadd.f32 %v538, %v973
  %v975 = vpop.f32.mrb[0].mxu0
  %v976 = vadd.f32 %v542, %v975
  %977 = vdwg.mxu0
  %978 = vmatprep.subr.bf16.mxu0 %v770
  %979 = vmatpush1.bf16.msra.mxu0 %v769
  %980 = vmatprep.subr.bf16.mxu0 %v772
  %981 = vmatpush1.bf16.msra.mxu0 %v771
  %982 = vmatprep.subr.bf16.mxu0 %v774
  %983 = vmatpush1.bf16.msra.mxu0 %v773
  %984 = vmatprep.subr.bf16.mxu0 %v776
  %985 = vmatpush1.bf16.msra.mxu0 %v775
  %986 = vmatprep.subr.bf16.mxu0 %v778
  %987 = vmatpush1.bf16.msra.mxu0 %v777
  %988 = vmatprep.subr.bf16.mxu0 %v780
  %989 = vmatpush1.bf16.msra.mxu0 %v779
  %990 = vmatprep.subr.bf16.mxu0 %v782
  %991 = vmatpush1.bf16.msra.mxu0 %v781
  %992 = vmatprep.subr.bf16.mxu0 %v784
  %993 = vmatpush1.bf16.msra.mxu0 %v783
  %994 = vmatprep.subr.bf16.mxu0 %v786
  %995 = vmatpush1.bf16.msra.mxu0 %v785
  %996 = vmatprep.subr.bf16.mxu0 %v788
  %997 = vmatpush1.bf16.msra.mxu0 %v787
  %998 = vmatprep.subr.bf16.mxu0 %v790
  %999 = vmatpush1.bf16.msra.mxu0 %v789
  %1000 = vmatprep.subr.bf16.mxu0 %v792
  %1001 = vmatpush1.bf16.msra.mxu0 %v791
  %1002 = vmatprep.subr.bf16.mxu0 %v794
  %1003 = vmatpush1.bf16.msra.mxu0 %v793
  %1004 = vmatprep.subr.bf16.mxu0 %v796
  %1005 = vmatpush1.bf16.msra.mxu0 %v795
  %1006 = vmatprep.subr.bf16.mxu0 %v798
  %1007 = vmatpush1.bf16.msra.mxu0 %v797
  %1008 = vmatprep.subr.bf16.mxu0 %v800
  %1009 = vmatpush1.bf16.msra.mxu0 %v799
  %1010 = vmatprep.mubr.bf16.mxu0 %v440
  %1011 = vmatmul.mubr.bf16.gmra.mrb[0].mxu0 %v439
  %v1012 = vpop.f32.mrb[0].mxu0
  %v1013 = vadd.f32 %v900, %v1012
  %v1014 = vpop.f32.mrb[0].mxu0
  %v1015 = vadd.f32 %v902, %v1014
  %v1016 = vpop.f32.mrb[0].mxu0
  %v1017 = vadd.f32 %v904, %v1016
  %v1018 = vpop.f32.mrb[0].mxu0
  %v1019 = vadd.f32 %v906, %v1018
  %1020 = vmatprep.mubr.bf16.mxu0 %v444
  %1021 = vmatmul.mubr.bf16.gmra.mrb[0].mxu0 %v443
  %v1022 = vpop.f32.mrb[0].mxu0
  %v1023 = vadd.f32 %v910, %v1022
  %v1024 = vpop.f32.mrb[0].mxu0
  %v1025 = vadd.f32 %v912, %v1024
  %v1026 = vpop.f32.mrb[0].mxu0
  %v1027 = vadd.f32 %v914, %v1026
  %v1028 = vpop.f32.mrb[0].mxu0
  %v1029 = vadd.f32 %v916, %v1028
  %1030 = vmatprep.mubr.bf16.mxu0 %v448
  %1031 = vmatmul.mubr.bf16.gmra.mrb[0].mxu0 %v447
  %v1032 = vpop.f32.mrb[0].mxu0
  %v1033 = vadd.f32 %v920, %v1032
  %v1034 = vpop.f32.mrb[0].mxu0
  %v1035 = vadd.f32 %v922, %v1034
  %v1036 = vpop.f32.mrb[0].mxu0
  %v1037 = vadd.f32 %v924, %v1036
  %v1038 = vpop.f32.mrb[0].mxu0
  %v1039 = vadd.f32 %v926, %v1038
  %1040 = vmatprep.mubr.bf16.mxu0 %v452
  %1041 = vmatmul.mubr.bf16.gmra.mrb[0].mxu0 %v451
  %v1042 = vpop.f32.mrb[0].mxu0
  %v1043 = vadd.f32 %v930, %v1042
  %v1044 = vpop.f32.mrb[0].mxu0
  %v1045 = vadd.f32 %v932, %v1044
  %v1046 = vpop.f32.mrb[0].mxu0
  %v1047 = vadd.f32 %v934, %v1046
  %v1048 = vpop.f32.mrb[0].mxu0
  %v1049 = vadd.f32 %v936, %v1048
  %1050 = vmatprep.mubr.bf16.mxu0 %v456
  %1051 = vmatmul.mubr.bf16.gmra.mrb[0].mxu0 %v455
  %v1052 = vpop.f32.mrb[0].mxu0
  %v1053 = vadd.f32 %v940, %v1052
  %v1054 = vpop.f32.mrb[0].mxu0
  %v1055 = vadd.f32 %v942, %v1054
  %v1056 = vpop.f32.mrb[0].mxu0
  %v1057 = vadd.f32 %v944, %v1056
  %v1058 = vpop.f32.mrb[0].mxu0
  %v1059 = vadd.f32 %v946, %v1058
  %1060 = vmatprep.mubr.bf16.mxu0 %v460
  %1061 = vmatmul.mubr.bf16.gmra.mrb[0].mxu0 %v459
  %v1062 = vpop.f32.mrb[0].mxu0
  %v1063 = vadd.f32 %v950, %v1062
  %v1064 = vpop.f32.mrb[0].mxu0
  %v1065 = vadd.f32 %v952, %v1064
  %v1066 = vpop.f32.mrb[0].mxu0
  %v1067 = vadd.f32 %v954, %v1066
  %v1068 = vpop.f32.mrb[0].mxu0
  %v1069 = vadd.f32 %v956, %v1068
  %1070 = vmatprep.mubr.bf16.mxu0 %v464
  %1071 = vmatmul.mubr.bf16.gmra.mrb[0].mxu0 %v463
  %v1072 = vpop.f32.mrb[0].mxu0
  %v1073 = vadd.f32 %v960, %v1072
  %v1074 = vpop.f32.mrb[0].mxu0
  %v1075 = vadd.f32 %v962, %v1074
  %v1076 = vpop.f32.mrb[0].mxu0
  %v1077 = vadd.f32 %v964, %v1076
  %v1078 = vpop.f32.mrb[0].mxu0
  %v1079 = vadd.f32 %v966, %v1078
  %1080 = vmatprep.mubr.bf16.mxu0 %v468
  %1081 = vmatmul.mubr.bf16.gmra.mrb[0].mxu0 %v467
  %v1082 = vpop.f32.mrb[0].mxu0
  %v1083 = vadd.f32 %v970, %v1082
  %v1084 = vpop.f32.mrb[0].mxu0
  %v1085 = vadd.f32 %v972, %v1084
  %v1086 = vpop.f32.mrb[0].mxu0
  %v1087 = vadd.f32 %v974, %v1086
  %v1088 = vpop.f32.mrb[0].mxu0
  %v1089 = vadd.f32 %v976, %v1088
  %1090 = vdwg.mxu0
  %v1091 = vmax.f32 %v1013, 0.0
  %v1092 = vmax.f32 %v1015, 0.0
  %v1093 = vmax.f32 %v1017, 0.0
  %v1094 = vmax.f32 %v1019, 0.0
  %v1095 = vmax.f32 %v1023, 0.0
  %v1096 = vmax.f32 %v1025, 0.0
  %v1097 = vmax.f32 %v1027, 0.0
  %v1098 = vmax.f32 %v1029, 0.0
  %v1099 = vmax.f32 %v1033, 0.0
  %v1100 = vmax.f32 %v1035, 0.0
  %v1101 = vmax.f32 %v1037, 0.0
  %v1102 = vmax.f32 %v1039, 0.0
  %v1103 = vmax.f32 %v1043, 0.0
  %v1104 = vmax.f32 %v1045, 0.0
  %v1105 = vmax.f32 %v1047, 0.0
  %v1106 = vmax.f32 %v1049, 0.0
  %v1107 = vmax.f32 %v1053, 0.0
  %v1108 = vmax.f32 %v1055, 0.0
  %v1109 = vmax.f32 %v1057, 0.0
  %v1110 = vmax.f32 %v1059, 0.0
  %v1111 = vmax.f32 %v1063, 0.0
  %v1112 = vmax.f32 %v1065, 0.0
  %v1113 = vmax.f32 %v1067, 0.0
  %v1114 = vmax.f32 %v1069, 0.0
  %v1115 = vmax.f32 %v1073, 0.0
  %v1116 = vmax.f32 %v1075, 0.0
  %v1117 = vmax.f32 %v1077, 0.0
  %v1118 = vmax.f32 %v1079, 0.0
  %v1119 = vmax.f32 %v1083, 0.0
  %v1120 = vmax.f32 %v1085, 0.0
  %v1121 = vmax.f32 %v1087, 0.0
  %v1122 = vmax.f32 %v1089, 0.0
  %v1123 = vld [vmem:[%s5] sm:$0x3]
  %v1125 = vlaneseq
  %v1126 = vshrl.u32 %v1125, 7
  %v1127 = vsub.s32 0, %v1126
  %v1128 = vrot.slane %v1123, %v1127
  %v1129 = vlaneseq
  %v1130 = vshrl.u32 %v1129, 7
  %v1131 = vsub.s32 1, %v1130
  %v1132 = vrot.slane %v1123, %v1131
  %v1135 = vmul.f32 %v1091, %v1128
  %v1136 = vmul.f32 %v1092, %v1132
  %v1137 = vmul.f32 %v1093, %v1128
  %v1138 = vmul.f32 %v1094, %v1132
  %v1139 = vmul.f32 %v1095, %v1128
  %v1140 = vmul.f32 %v1096, %v1132
  %v1141 = vmul.f32 %v1097, %v1128
  %v1142 = vmul.f32 %v1098, %v1132
  %v1143 = vmul.f32 %v1099, %v1128
  %v1144 = vmul.f32 %v1100, %v1132
  %v1145 = vmul.f32 %v1101, %v1128
  %v1146 = vmul.f32 %v1102, %v1132
  %v1147 = vmul.f32 %v1103, %v1128
  %v1148 = vmul.f32 %v1104, %v1132
  %v1149 = vmul.f32 %v1105, %v1128
  %v1150 = vmul.f32 %v1106, %v1132
  %v1151 = vmul.f32 %v1107, %v1128
  %v1152 = vmul.f32 %v1108, %v1132
  %v1153 = vmul.f32 %v1109, %v1128
  %v1154 = vmul.f32 %v1110, %v1132
  %v1155 = vmul.f32 %v1111, %v1128
  %v1156 = vmul.f32 %v1112, %v1132
  %v1157 = vmul.f32 %v1113, %v1128
  %v1158 = vmul.f32 %v1114, %v1132
  %v1159 = vmul.f32 %v1115, %v1128
  %v1160 = vmul.f32 %v1116, %v1132
  %v1161 = vmul.f32 %v1117, %v1128
  %v1162 = vmul.f32 %v1118, %v1132
  %v1163 = vmul.f32 %v1119, %v1128
  %v1164 = vmul.f32 %v1120, %v1132
  %v1165 = vmul.f32 %v1121, %v1128
  %v1166 = vmul.f32 %v1122, %v1132
  %v1167 = vadd.f32 %v1135, %v1136
  %1168 = vadd.xlane.f32.xlu0 %v1167
  %v1169 = vpop.xlane.xlu0 %1168
  %v1170 = vadd.f32 %v1137, %v1138
  %1171 = vadd.xlane.f32.xlu0 %v1170
  %v1172 = vpop.xlane.xlu0 %1171
  %v1173 = vadd.f32 %v1139, %v1140
  %1174 = vadd.xlane.f32.xlu0 %v1173
  %v1175 = vpop.xlane.xlu0 %1174
  %v1176 = vadd.f32 %v1141, %v1142
  %1177 = vadd.xlane.f32.xlu0 %v1176
  %v1178 = vpop.xlane.xlu0 %1177
  %v1179 = vadd.f32 %v1143, %v1144
  %1180 = vadd.xlane.f32.xlu0 %v1179
  %v1181 = vpop.xlane.xlu0 %1180
  %v1182 = vadd.f32 %v1145, %v1146
  %1183 = vadd.xlane.f32.xlu0 %v1182
  %v1184 = vpop.xlane.xlu0 %1183
  %v1185 = vadd.f32 %v1147, %v1148
  %1186 = vadd.xlane.f32.xlu0 %v1185
  %v1187 = vpop.xlane.xlu0 %1186
  %v1188 = vadd.f32 %v1149, %v1150
  %1189 = vadd.xlane.f32.xlu0 %v1188
  %v1190 = vpop.xlane.xlu0 %1189
  %v1191 = vadd.f32 %v1151, %v1152
  %1192 = vadd.xlane.f32.xlu0 %v1191
  %v1193 = vpop.xlane.xlu0 %1192
  %v1194 = vadd.f32 %v1153, %v1154
  %1195 = vadd.xlane.f32.xlu0 %v1194
  %v1196 = vpop.xlane.xlu0 %1195
  %v1197 = vadd.f32 %v1155, %v1156
  %1198 = vadd.xlane.f32.xlu0 %v1197
  %v1199 = vpop.xlane.xlu0 %1198
  %v1200 = vadd.f32 %v1157, %v1158
  %1201 = vadd.xlane.f32.xlu0 %v1200
  %v1202 = vpop.xlane.xlu0 %1201
  %v1203 = vadd.f32 %v1159, %v1160
  %1204 = vadd.xlane.f32.xlu0 %v1203
  %v1205 = vpop.xlane.xlu0 %1204
  %v1206 = vadd.f32 %v1161, %v1162
  %1207 = vadd.xlane.f32.xlu0 %v1206
  %v1208 = vpop.xlane.xlu0 %1207
  %v1209 = vadd.f32 %v1163, %v1164
  %1210 = vadd.xlane.f32.xlu0 %v1209
  %v1211 = vpop.xlane.xlu0 %1210
  %v1212 = vadd.f32 %v1165, %v1166
  %1213 = vadd.xlane.f32.xlu0 %v1212
  %v1214 = vpop.xlane.xlu0 %1213
  %s1215 = sld [smem:[#allocation2]]
  %v1216 = vstv %s1215
  %v1217 = vadd.f32 %v1169, %v1216
  %v1218 = vadd.f32 %v1172, %v1216
  %v1219 = vadd.f32 %v1175, %v1216
  %v1220 = vadd.f32 %v1178, %v1216
  %v1221 = vadd.f32 %v1181, %v1216
  %v1222 = vadd.f32 %v1184, %v1216
  %v1223 = vadd.f32 %v1187, %v1216
  %v1224 = vadd.f32 %v1190, %v1216
  %v1225 = vadd.f32 %v1193, %v1216
  %v1226 = vadd.f32 %v1196, %v1216
  %v1227 = vadd.f32 %v1199, %v1216
  %v1228 = vadd.f32 %v1202, %v1216
  %v1229 = vadd.f32 %v1205, %v1216
  %v1230 = vadd.f32 %v1208, %v1216
  %v1231 = vadd.f32 %v1211, %v1216
  %v1232 = vadd.f32 %v1214, %v1216
  %vm1233 = vcmask 7168
  %1234 = vst.msk [vmem:[%s7] sm:$0xff] %vm1233, %v1217
  %1235 = vst.msk [vmem:[%s7 + $0x8] sm:$0xff] %vm1233, %v1218
  %1236 = vst.msk [vmem:[%s7 + $0x10] sm:$0xff] %vm1233, %v1219
  %1237 = vst.msk [vmem:[%s7 + $0x18] sm:$0xff] %vm1233, %v1220
  %1238 = vst.msk [vmem:[%s7 + $0x20] sm:$0xff] %vm1233, %v1221
  %1239 = vst.msk [vmem:[%s7 + $0x28] sm:$0xff] %vm1233, %v1222
  %1240 = vst.msk [vmem:[%s7 + $0x30] sm:$0xff] %vm1233, %v1223
  %1241 = vst.msk [vmem:[%s7 + $0x38] sm:$0xff] %vm1233, %v1224
  %1242 = vst.msk [vmem:[%s7 + $0x40] sm:$0xff] %vm1233, %v1225
  %1243 = vst.msk [vmem:[%s7 + $0x48] sm:$0xff] %vm1233, %v1226
  %1244 = vst.msk [vmem:[%s7 + $0x50] sm:$0xff] %vm1233, %v1227
  %1245 = vst.msk [vmem:[%s7 + $0x58] sm:$0xff] %vm1233, %v1228
  %1246 = vst.msk [vmem:[%s7 + $0x60] sm:$0xff] %vm1233, %v1229
  %1247 = vst.msk [vmem:[%s7 + $0x68] sm:$0xff] %vm1233, %v1230
  %1248 = vst.msk [vmem:[%s7 + $0x70] sm:$0xff] %vm1233, %v1231
  %1249 = vst.msk [vmem:[%s7 + $0x78] sm:$0xff] %vm1233, %v1232
  // Predicated region
  $region30: #{surrogate_forward.1} parent=0 // pred_check
    _
  $region31: #{surrogate_forward.1} parent=0 // pred_check_branch
    %1251 = sbr.rel (0) target = $region33
  $region32: #{surrogate_forward.1} parent=0 // pred_region
    _
  $region33: #{surrogate_forward.1} parent=0 // pred_fallthru
    _
  // Predicated region
  $region34: #{surrogate_forward.1} parent=0 // pred_check
    _
  $region35: #{surrogate_forward.1} parent=0 // pred_check_branch
    %1253 = sbr.rel (0) target = $region37
  $region36: #{surrogate_forward.1} parent=0 // pred_region
    _
  $region37: #{surrogate_forward.1} parent=0 // pred_fallthru
    _

</llo_original>
